<compile_context>
chip_gen: v5e
topology: v5e:2x2
jax: 0.10.0
libtpu: 0.0.40
codegen_flags: <defaults>
</compile_context>

<pallas_src>
import functools

import jax
import jax.numpy as jnp
from jax.experimental import pallas as pl
from jax.experimental.pallas import tpu as pltpu

IN_FEATURES = 784
HIDDEN = 256
OUT_FEATURES = 10

K_PAD = 896      # 7 * 128: contraction dim padded to a lane multiple
OUT_PAD = 128    # lane-dense output tile width
NEG_BIG = -1e30  # bias for padded logit columns -> exp() == 0 in the softmax


def _round_up(x, m):
    return (x + m - 1) // m * m


def ann_kernel(x_ref, w1_ref, b1_ref, w2_ref, b2_ref, o_ref):
    # Dense 1: bf16 MXU matmul with f32 accumulation; bias + ReLU in f32.
    h = jnp.dot(x_ref[...], w1_ref[...], preferred_element_type=jnp.float32)
    h = jnp.maximum(h + b1_ref[...], 0.0)

    # Dense 2: cast activations to the (bf16) weight dtype for the MXU, accumulate in f32.
    logits = jnp.dot(h.astype(w2_ref.dtype), w2_ref[...],
                     preferred_element_type=jnp.float32) + b2_ref[...]

    # Numerically stable log_softmax along the lane dim.  Padded columns carry a
    # -1e30 bias, so they never win the max and add exactly 0 to the exp-sum.
    m = jnp.max(logits, axis=-1, keepdims=True)
    shifted = logits - m
    lse = jnp.log(jnp.sum(jnp.exp(shifted), axis=-1, keepdims=True))
    o_ref[...] = (shifted - lse).astype(o_ref.dtype)


@jax.jit
def ann_forward(x, w1, b1, w2, b2):
    B = x.shape[0]
    x2d = x.reshape(B, -1).astype(w1.dtype)          # x.view(B, -1); bf16 halves DMA
    assert x2d.shape[1] == IN_FEATURES

    # Pad contraction dim 784 -> 896 (w1 was padded with zero rows at init).
    x2d = jnp.pad(x2d, ((0, 0), (0, K_PAD - IN_FEATURES)))

    # Batch tile: multiple of 8 (sublane), up to 256 (MXU M dim on v6e/v7x).
    tile_b = min(256, _round_up(B, 8))
    b_pad = _round_up(B, tile_b)
    if b_pad != B:
        x2d = jnp.pad(x2d, ((0, b_pad - B), (0, 0)))

    grid = (b_pad // tile_b,)

    cost = pl.CostEstimate(
        flops=2 * b_pad * K_PAD * HIDDEN + 2 * b_pad * HIDDEN * OUT_PAD,
        transcendentals=b_pad * OUT_PAD,
        bytes_accessed=(x2d.size * x2d.dtype.itemsize
                        + w1.size * w1.dtype.itemsize
                        + w2.size * w2.dtype.itemsize
                        + b1.size * b1.dtype.itemsize
                        + b2.size * b2.dtype.itemsize
                        + b_pad * OUT_PAD * 4),
    )

    out = pl.pallas_call(
        ann_kernel,
        out_shape=jax.ShapeDtypeStruct((b_pad, OUT_PAD), jnp.float32),
        grid=grid,
        in_specs=[
            pl.BlockSpec((tile_b, K_PAD), lambda i: (i, 0)),    # x: tiled over batch
            pl.BlockSpec((K_PAD, HIDDEN), lambda i: (0, 0)),    # w1: resident in VMEM
            pl.BlockSpec((1, HIDDEN), lambda i: (0, 0)),        # b1: resident
            pl.BlockSpec((HIDDEN, OUT_PAD), lambda i: (0, 0)),  # w2: resident
            pl.BlockSpec((1, OUT_PAD), lambda i: (0, 0)),       # b2: resident
        ],
        out_specs=pl.BlockSpec((tile_b, OUT_PAD), lambda i: (i, 0)),
        compiler_params=pltpu.CompilerParams(
            dimension_semantics=("parallel",),  # megacore sharding on v7x
        ),
        cost_estimate=cost,
    )(x2d, w1, b1, w2, b2)

    # Strip batch padding and the 118 padded logit lanes.
    return out[:B, :OUT_FEATURES]


def init_params(key, weight_dtype=jnp.bfloat16):
    """nn.Linear-style U(-1/sqrt(fan_in)) init, pre-transposed and padded for the kernel."""
    k1, k2, k3, k4 = jax.random.split(key, 4)
    lim1 = 1.0 / (IN_FEATURES ** 0.5)
    lim2 = 1.0 / (HIDDEN ** 0.5)

    # Weights stored [in, out] so the kernel computes x @ W (PyTorch does x @ W.T).
    w1 = jax.random.uniform(k1, (IN_FEATURES, HIDDEN), jnp.float32, -lim1, lim1)
    b1 = jax.random.uniform(k2, (1, HIDDEN), jnp.float32, -lim1, lim1)
    w2 = jax.random.uniform(k3, (HIDDEN, OUT_FEATURES), jnp.float32, -lim2, lim2)
    b2 = jax.random.uniform(k4, (1, OUT_FEATURES), jnp.float32, -lim2, lim2)

    # Pad K (784 -> 896) with zero rows, and the output lanes (10 -> 128) with zero weight
    # columns + NEG_BIG bias so the padded logits vanish under the softmax.
    w1 = jnp.pad(w1, ((0, K_PAD - IN_FEATURES), (0, 0))).astype(weight_dtype)
    w2 = jnp.pad(w2, ((0, 0), (0, OUT_PAD - OUT_FEATURES))).astype(weight_dtype)
    b2 = jnp.pad(b2, ((0, 0), (0, OUT_PAD - OUT_FEATURES)), constant_values=NEG_BIG)
    return w1, b1, w2, b2


def _reference_forward(x, w1, b1, w2, b2):
    """Plain-JAX forward with identical padded/bf16 parameters (for verification)."""
    B = x.shape[0]
    x2d = x.reshape(B, -1).astype(w1.dtype)
    x2d = jnp.pad(x2d, ((0, 0), (0, K_PAD - IN_FEATURES)))
    h = jnp.maximum(jnp.dot(x2d, w1, preferred_element_type=jnp.float32) + b1, 0.0)
    logits = jnp.dot(h.astype(w2.dtype), w2, preferred_element_type=jnp.float32) + b2
    return jax.nn.log_softmax(logits, axis=-1)[:, :OUT_FEATURES]


if __name__ == "__main__":
    key = jax.random.PRNGKey(0)
    kx, kp = jax.random.split(key)

    B = 8
    # MNIST-like input: [B, 1, 28, 28] (NCHW), flattened inside forward.
    x = jax.random.normal(kx, (B, 1, 28, 28), jnp.float32)
    w1, b1, w2, b2 = init_params(kp)

    out = ann_forward(x, w1, b1, w2, b2)
    jax.block_until_ready(out)

    assert out.shape == (B, OUT_FEATURES)

    # log_softmax rows must exp-sum to 1.
    row_sums = jnp.exp(out).sum(axis=1)
    assert jnp.allclose(row_sums, 1.0, atol=1e-4), row_sums

    # Match a plain-JAX reference using the same bf16 params.
    ref = _reference_forward(x, w1, b1, w2, b2)
    assert jnp.allclose(out, ref, atol=1e-2, rtol=1e-2), jnp.max(jnp.abs(out - ref))

    print("KERNEL_OK")
</pallas_src>

<mosaic_0001>
module attributes {stable_mosaic.version = 11 : i64} {
  func.func @ann_kernel(%arg0: i32, %arg1: memref<8x896xbf16, #tpu.memory_space<vmem>>, %arg2: memref<896x256xbf16, #tpu.memory_space<vmem>>, %arg3: memref<1x256xf32, #tpu.memory_space<vmem>>, %arg4: memref<256x128xbf16, #tpu.memory_space<vmem>>, %arg5: memref<1x128xf32, #tpu.memory_space<vmem>>, %arg6: memref<8x128xf32, #tpu.memory_space<vmem>>) attributes {dimension_semantics = [#tpu.dimension_semantics<parallel>], iteration_bounds = array<i64: 1>, scalar_prefetch = 0 : i64, scratch_operands = 0 : i64, tpu.core_type = #tpu.core_type<tc>, window_params = [{transform_indices = @transform_0, window_bounds = array<i64: 8, 896>}, {pipeline_mode = #tpu.pipeline_mode<synchronous>, transform_indices = @transform_1, window_bounds = array<i64: 896, 256>}, {pipeline_mode = #tpu.pipeline_mode<synchronous>, transform_indices = @transform_2, window_bounds = array<i64: 1, 256>}, {pipeline_mode = #tpu.pipeline_mode<synchronous>, transform_indices = @transform_3, window_bounds = array<i64: 256, 128>}, {pipeline_mode = #tpu.pipeline_mode<synchronous>, transform_indices = @transform_4, window_bounds = array<i64: 1, 128>}, {transform_indices = @transform_5, window_bounds = array<i64: 8, 128>}]} {
    %c0 = arith.constant 0 : index
    %c0_0 = arith.constant 0 : index
    %0 = vector.load %arg1[%c0, %c0_0] : memref<8x896xbf16, #tpu.memory_space<vmem>>, vector<8x896xbf16>
    %c0_1 = arith.constant 0 : index
    %c0_2 = arith.constant 0 : index
    %1 = vector.load %arg2[%c0_1, %c0_2] : memref<896x256xbf16, #tpu.memory_space<vmem>>, vector<896x256xbf16>
    %cst = arith.constant dense<0.000000e+00> : vector<8x256xf32>
    %2 = tpu.matmul %0, %1, %cst {dimension_numbers = #tpu.dot_dimension_numbers<[1], [0], [0], [1], [0, 0, 1, 1], [], []>} : vector<8x896xbf16>, vector<896x256xbf16>, vector<8x256xf32> -> vector<8x256xf32>
    %c0_3 = arith.constant 0 : index
    %c0_4 = arith.constant 0 : index
    %3 = vector.load %arg3[%c0_3, %c0_4] : memref<1x256xf32, #tpu.memory_space<vmem>>, vector<1x256xf32>
    %4 = vector.broadcast %3 : vector<1x256xf32> to vector<8x256xf32>
    %5 = arith.addf %2, %4 : vector<8x256xf32>
    %cst_5 = arith.constant 0.000000e+00 : f32
    %6 = vector.broadcast %cst_5 : f32 to vector<8x256xf32>
    %7 = arith.maximumf %5, %6 : vector<8x256xf32>
    %8 = arith.truncf %7 : vector<8x256xf32> to vector<8x256xbf16>
    %c0_6 = arith.constant 0 : index
    %c0_7 = arith.constant 0 : index
    %9 = vector.load %arg4[%c0_6, %c0_7] : memref<256x128xbf16, #tpu.memory_space<vmem>>, vector<256x128xbf16>
    %cst_8 = arith.constant dense<0.000000e+00> : vector<8x128xf32>
    %10 = tpu.matmul %8, %9, %cst_8 {dimension_numbers = #tpu.dot_dimension_numbers<[1], [0], [0], [1], [0, 0, 1, 1], [], []>} : vector<8x256xbf16>, vector<256x128xbf16>, vector<8x128xf32> -> vector<8x128xf32>
    %c0_9 = arith.constant 0 : index
    %c0_10 = arith.constant 0 : index
    %11 = vector.load %arg5[%c0_9, %c0_10] : memref<1x128xf32, #tpu.memory_space<vmem>>, vector<1x128xf32>
    %12 = vector.broadcast %11 : vector<1x128xf32> to vector<8x128xf32>
    %13 = arith.addf %10, %12 : vector<8x128xf32>
    %cst_11 = arith.constant dense<0xFF800000> : vector<8xf32>
    %14 = vector.multi_reduction <maximumf>, %13, %cst_11 [1] : vector<8x128xf32> to vector<8xf32>
    %15 = vector.shape_cast %14 : vector<8xf32> to vector<8x1xf32>
    %16 = vector.broadcast %15 : vector<8x1xf32> to vector<8x128xf32>
    %17 = arith.subf %13, %16 : vector<8x128xf32>
    %18 = math.exp %17 : vector<8x128xf32>
    %cst_12 = arith.constant dense<0.000000e+00> : vector<8xf32>
    %19 = vector.multi_reduction <add>, %18, %cst_12 [1] : vector<8x128xf32> to vector<8xf32>
    %20 = vector.shape_cast %19 : vector<8xf32> to vector<8x1xf32>
    %21 = math.log %20 : vector<8x1xf32>
    %22 = vector.broadcast %21 : vector<8x1xf32> to vector<8x128xf32>
    %23 = arith.subf %17, %22 : vector<8x128xf32>
    %c0_13 = arith.constant 0 : index
    %c0_14 = arith.constant 0 : index
    %24 = vector.load %arg6[%c0_13, %c0_14] : memref<8x128xf32, #tpu.memory_space<vmem>>, vector<8x128xf32>
    tpu.vector_store %arg6[%c0_13, %c0_14], %23 {strides = array<i32>} : memref<8x128xf32, #tpu.memory_space<vmem>>, vector<8x128xf32>,
    return
  }
  func.func @transform_0(%arg0: i32) -> (i32, i32) {
    %c0_i32 = arith.constant 0 : i32
    %c0_i32_0 = arith.constant 0 : i32
    return %arg0, %c0_i32 : i32, i32
  }
  func.func @transform_1(%arg0: i32) -> (i32, i32) {
    %c0_i32 = arith.constant 0 : i32
    %c0_i32_0 = arith.constant 0 : i32
    %c0_i32_1 = arith.constant 0 : i32
    return %c0_i32, %c0_i32_0 : i32, i32
  }
  func.func @transform_2(%arg0: i32) -> (i32, i32) {
    %c0_i32 = arith.constant 0 : i32
    %c0_i32_0 = arith.constant 0 : i32
    %c0_i32_1 = arith.constant 0 : i32
    return %c0_i32, %c0_i32_0 : i32, i32
  }
  func.func @transform_3(%arg0: i32) -> (i32, i32) {
    %c0_i32 = arith.constant 0 : i32
    %c0_i32_0 = arith.constant 0 : i32
    %c0_i32_1 = arith.constant 0 : i32
    return %c0_i32, %c0_i32_0 : i32, i32
  }
  func.func @transform_4(%arg0: i32) -> (i32, i32) {
    %c0_i32 = arith.constant 0 : i32
    %c0_i32_0 = arith.constant 0 : i32
    %c0_i32_1 = arith.constant 0 : i32
    return %c0_i32, %c0_i32_0 : i32, i32
  }
  func.func @transform_5(%arg0: i32) -> (i32, i32) {
    %c0_i32 = arith.constant 0 : i32
    %c0_i32_0 = arith.constant 0 : i32
    return %arg0, %c0_i32 : i32, i32
  }
}

</mosaic_0001>

<llo_original>
// kernel: ann_forward.1
$region0: #{ann_forward.1}
  #allocation0 [shape = 'u32[]', space=smem, size = 0x4, offset = 0x4, fixed_abs, tag = 'smem constant byte address 0x4 - core index']
  #allocation1 [shape = 'u32[72,128]{1,0:T(1,128)}', space=vmem, size = 0x9000, scoped, tag = 'internal scratch']
  %s0 = inlined_call_operand.vmem [shape: bf16[8,896], index: 0, kind: input, shape index: {}]
  %s1 = inlined_call_operand.hbm [shape: bf16[896,256], index: 1, kind: input, shape index: {}]
  %s2 = inlined_call_operand.vmem [shape: f32[1,256], index: 2, kind: input, shape index: {}]
  %s3 = inlined_call_operand.vmem [shape: bf16[256,128], index: 3, kind: input, shape index: {}]
  %s4 = inlined_call_operand.vmem [shape: f32[1,128], index: 4, kind: input, shape index: {}]
  %s5 = inlined_call_operand.hbm [shape: f32[8,128], index: 5, kind: output, shape index: {}]
  %s6 = sld [smem:[#allocation0]]
  $region34: #{ann_forward.1} parent=0
    _
  %s8 = ssub.s32 1, %s6
  %s9 = scalar_select 0, %s8, %s6
  $region1: #{ann_forward.1} parent=0
    #allocation2 [shape = 'u8[458752]{0}', space=vmem, size = 0x70000, scoped, tag = 'input window, operand 1, single buffered']
    #allocation3 [shape = 's32[1]{0}', space=sflag, size = 0x4, scoped, tag = 'scoped memory for ann_forward.1']
    #allocation4 [shape = 's32[1]{0}', space=sflag, size = 0x4, scoped, tag = 'scoped memory for ann_forward.1']
    #allocation5 [shape = 'u8[4096]{0}', space=vmem, size = 0x1000, scoped, tag = 'output window, operand 0, single buffered']
    %10 = vsyncpa [#allocation3], 0
    %11 = vsyncpa [#allocation4], 0
    // Predicated region
    $region2: #{ann_forward.1} parent=1 // pred_check
      _
    $region3: #{ann_forward.1} parent=1 // pred_check_branch
      %13 = sbr.rel (0) target = $region5
    $region4: #{ann_forward.1} parent=1 // pred_region
      _
    $region5: #{ann_forward.1} parent=1 // pred_fallthru
      _
    // Predicated region
    $region6: #{ann_forward.1} parent=1 // pred_check
      _
    $region7: #{ann_forward.1} parent=1 // pred_check_branch
      %15 = sbr.rel (0) target = $region9
    $region8: #{ann_forward.1} parent=1 // pred_region
      %17 = vsyncadd [#allocation3], 0
      %s18 = sshll.u32 %s1, 4
      %s19 = int_to_ptr.hbm [resolvable:$true] %s18
      %s20 = sshll.u32 [#allocation2], 4
      %s21 = int_to_ptr.vmem [resolvable:$true] %s20
      %26 = dma.hbm_to_vmem [thread:$0]  %s19, 14336, %s21, [#allocation3], 128, 128, 8
    $region9: #{ann_forward.1} parent=1 // pred_fallthru
      _
    // Predicated region
    $region10: #{ann_forward.1} parent=1 // pred_check
      _
    $region11: #{ann_forward.1} parent=1 // pred_check_branch
      %28 = sbr.rel (0) target = $region13
    $region12: #{ann_forward.1} parent=1 // pred_region
      _
    $region13: #{ann_forward.1} parent=1 // pred_fallthru
      _
    // Predicated region
    $region14: #{ann_forward.1} parent=1 // pred_check
      _
    $region15: #{ann_forward.1} parent=1 // pred_check_branch
      %30 = sbr.rel (0) target = $region17
    $region16: #{ann_forward.1} parent=1 // pred_region
      _
    $region17: #{ann_forward.1} parent=1 // pred_fallthru
      _
    // Predicated region
    $region18: #{ann_forward.1} parent=1 // pred_check
      _
    $region19: #{ann_forward.1} parent=1 // pred_check_branch
      %32 = sbr.rel (0) target = $region21
    $region20: #{ann_forward.1} parent=1 // pred_region
      _
    $region21: #{ann_forward.1} parent=1 // pred_fallthru
      _
    // Predicated region
    $region22: #{ann_forward.1} parent=1 // pred_check
      _
    $region23: #{ann_forward.1} parent=1 // pred_check_branch
      %34 = sbr.rel (0) target = $region25
    $region24: #{ann_forward.1} parent=1 // pred_region
      %36 = dma.done [#allocation3], 14336
    $region25: #{ann_forward.1} parent=1 // pred_fallthru
      _
    %v37 = vld [vmem:[%s0] sm:$0xff]
    %v38 = vld [vmem:[%s0 + $0x8] sm:$0xff]
    %v39 = vld [vmem:[%s0 + $0x10] sm:$0xff]
    %v40 = vld [vmem:[%s0 + $0x18] sm:$0xf]
    %v41 = vld [vmem:[#allocation2] sm:$0xff]
    %v42 = vld [vmem:[#allocation2 + $0x8] sm:$0xff]
    %v43 = vld [vmem:[#allocation2 + $0x10] sm:$0xff]
    %v44 = vld [vmem:[#allocation2 + $0x18] sm:$0xff]
    %v45 = vld [vmem:[#allocation2 + $0x20] sm:$0xff]
    %v46 = vld [vmem:[#allocation2 + $0x28] sm:$0xff]
    %v47 = vld [vmem:[#allocation2 + $0x30] sm:$0xff]
    %v48 = vld [vmem:[#allocation2 + $0x38] sm:$0xff]
    %v49 = vld [vmem:[#allocation2 + $0x40] sm:$0xff]
    %v50 = vld [vmem:[#allocation2 + $0x48] sm:$0xff]
    %v51 = vld [vmem:[#allocation2 + $0x50] sm:$0xff]
    %v52 = vld [vmem:[#allocation2 + $0x58] sm:$0xff]
    %v53 = vld [vmem:[#allocation2 + $0x60] sm:$0xff]
    %v54 = vld [vmem:[#allocation2 + $0x68] sm:$0xff]
    %v55 = vld [vmem:[#allocation2 + $0x70] sm:$0xff]
    %v56 = vld [vmem:[#allocation2 + $0x78] sm:$0xff]
    %v57 = vld [vmem:[#allocation2 + $0x80] sm:$0xff]
    %v58 = vld [vmem:[#allocation2 + $0x88] sm:$0xff]
    %v59 = vld [vmem:[#allocation2 + $0x90] sm:$0xff]
    %v60 = vld [vmem:[#allocation2 + $0x98] sm:$0xff]
    %v61 = vld [vmem:[#allocation2 + $0xa0] sm:$0xff]
    %v62 = vld [vmem:[#allocation2 + $0xa8] sm:$0xff]
    %v63 = vld [vmem:[#allocation2 + $0xb0] sm:$0xff]
    %v64 = vld [vmem:[#allocation2 + $0xb8] sm:$0xff]
    %v65 = vld [vmem:[#allocation2 + $0xc0] sm:$0xff]
    %v66 = vld [vmem:[#allocation2 + $0xc8] sm:$0xff]
    %v67 = vld [vmem:[#allocation2 + $0xd0] sm:$0xff]
    %v68 = vld [vmem:[#allocation2 + $0xd8] sm:$0xff]
    %v69 = vld [vmem:[#allocation2 + $0xe0] sm:$0xff]
    %v70 = vld [vmem:[#allocation2 + $0xe8] sm:$0xff]
    %v71 = vld [vmem:[#allocation2 + $0xf0] sm:$0xff]
    %v72 = vld [vmem:[#allocation2 + $0xf8] sm:$0xff]
    %v73 = vld [vmem:[#allocation2 + $0x100] sm:$0xff]
    %v74 = vld [vmem:[#allocation2 + $0x108] sm:$0xff]
    %v75 = vld [vmem:[#allocation2 + $0x110] sm:$0xff]
    %v76 = vld [vmem:[#allocation2 + $0x118] sm:$0xff]
    %v77 = vld [vmem:[#allocation2 + $0x120] sm:$0xff]
    %v78 = vld [vmem:[#allocation2 + $0x128] sm:$0xff]
    %v79 = vld [vmem:[#allocation2 + $0x130] sm:$0xff]
    %v80 = vld [vmem:[#allocation2 + $0x138] sm:$0xff]
    %v81 = vld [vmem:[#allocation2 + $0x140] sm:$0xff]
    %v82 = vld [vmem:[#allocation2 + $0x148] sm:$0xff]
    %v83 = vld [vmem:[#allocation2 + $0x150] sm:$0xff]
    %v84 = vld [vmem:[#allocation2 + $0x158] sm:$0xff]
    %v85 = vld [vmem:[#allocation2 + $0x160] sm:$0xff]
    %v86 = vld [vmem:[#allocation2 + $0x168] sm:$0xff]
    %v87 = vld [vmem:[#allocation2 + $0x170] sm:$0xff]
    %v88 = vld [vmem:[#allocation2 + $0x178] sm:$0xff]
    %v89 = vld [vmem:[#allocation2 + $0x180] sm:$0xff]
    %v90 = vld [vmem:[#allocation2 + $0x188] sm:$0xff]
    %v91 = vld [vmem:[#allocation2 + $0x190] sm:$0xff]
    %v92 = vld [vmem:[#allocation2 + $0x198] sm:$0xff]
    %v93 = vld [vmem:[#allocation2 + $0x1a0] sm:$0xff]
    %v94 = vld [vmem:[#allocation2 + $0x1a8] sm:$0xff]
    %v95 = vld [vmem:[#allocation2 + $0x1b0] sm:$0xff]
    %v96 = vld [vmem:[#allocation2 + $0x1b8] sm:$0xff]
    %v97 = vld [vmem:[#allocation2 + $0x1c0] sm:$0xff]
    %v98 = vld [vmem:[#allocation2 + $0x1c8] sm:$0xff]
    %v99 = vld [vmem:[#allocation2 + $0x1d0] sm:$0xff]
    %v100 = vld [vmem:[#allocation2 + $0x1d8] sm:$0xff]
    %v101 = vld [vmem:[#allocation2 + $0x1e0] sm:$0xff]
    %v102 = vld [vmem:[#allocation2 + $0x1e8] sm:$0xff]
    %v103 = vld [vmem:[#allocation2 + $0x1f0] sm:$0xff]
    %v104 = vld [vmem:[#allocation2 + $0x1f8] sm:$0xff]
    %v105 = vld [vmem:[#allocation2 + $0x200] sm:$0xff]
    %v106 = vld [vmem:[#allocation2 + $0x208] sm:$0xff]
    %v107 = vld [vmem:[#allocation2 + $0x210] sm:$0xff]
    %v108 = vld [vmem:[#allocation2 + $0x218] sm:$0xff]
    %v109 = vld [vmem:[#allocation2 + $0x220] sm:$0xff]
    %v110 = vld [vmem:[#allocation2 + $0x228] sm:$0xff]
    %v111 = vld [vmem:[#allocation2 + $0x230] sm:$0xff]
    %v112 = vld [vmem:[#allocation2 + $0x238] sm:$0xff]
    %v113 = vld [vmem:[#allocation2 + $0x240] sm:$0xff]
    %v114 = vld [vmem:[#allocation2 + $0x248] sm:$0xff]
    %v115 = vld [vmem:[#allocation2 + $0x250] sm:$0xff]
    %v116 = vld [vmem:[#allocation2 + $0x258] sm:$0xff]
    %v117 = vld [vmem:[#allocation2 + $0x260] sm:$0xff]
    %v118 = vld [vmem:[#allocation2 + $0x268] sm:$0xff]
    %v119 = vld [vmem:[#allocation2 + $0x270] sm:$0xff]
    %v120 = vld [vmem:[#allocation2 + $0x278] sm:$0xff]
    %v121 = vld [vmem:[#allocation2 + $0x280] sm:$0xff]
    %v122 = vld [vmem:[#allocation2 + $0x288] sm:$0xff]
    %v123 = vld [vmem:[#allocation2 + $0x290] sm:$0xff]
    %v124 = vld [vmem:[#allocation2 + $0x298] sm:$0xff]
    %v125 = vld [vmem:[#allocation2 + $0x2a0] sm:$0xff]
    %v126 = vld [vmem:[#allocation2 + $0x2a8] sm:$0xff]
    %v127 = vld [vmem:[#allocation2 + $0x2b0] sm:$0xff]
    %v128 = vld [vmem:[#allocation2 + $0x2b8] sm:$0xff]
    %v129 = vld [vmem:[#allocation2 + $0x2c0] sm:$0xff]
    %v130 = vld [vmem:[#allocation2 + $0x2c8] sm:$0xff]
    %v131 = vld [vmem:[#allocation2 + $0x2d0] sm:$0xff]
    %v132 = vld [vmem:[#allocation2 + $0x2d8] sm:$0xff]
    %v133 = vld [vmem:[#allocation2 + $0x2e0] sm:$0xff]
    %v134 = vld [vmem:[#allocation2 + $0x2e8] sm:$0xff]
    %v135 = vld [vmem:[#allocation2 + $0x2f0] sm:$0xff]
    %v136 = vld [vmem:[#allocation2 + $0x2f8] sm:$0xff]
    %v137 = vld [vmem:[#allocation2 + $0x300] sm:$0xff]
    %v138 = vld [vmem:[#allocation2 + $0x308] sm:$0xff]
    %v139 = vld [vmem:[#allocation2 + $0x310] sm:$0xff]
    %v140 = vld [vmem:[#allocation2 + $0x318] sm:$0xff]
    %v141 = vld [vmem:[#allocation2 + $0x320] sm:$0xff]
    %v142 = vld [vmem:[#allocation2 + $0x328] sm:$0xff]
    %v143 = vld [vmem:[#allocation2 + $0x330] sm:$0xff]
    %v144 = vld [vmem:[#allocation2 + $0x338] sm:$0xff]
    %v145 = vld [vmem:[#allocation2 + $0x340] sm:$0xff]
    %v146 = vld [vmem:[#allocation2 + $0x348] sm:$0xff]
    %v147 = vld [vmem:[#allocation2 + $0x350] sm:$0xff]
    %v148 = vld [vmem:[#allocation2 + $0x358] sm:$0xff]
    %v149 = vld [vmem:[#allocation2 + $0x360] sm:$0xff]
    %v150 = vld [vmem:[#allocation2 + $0x368] sm:$0xff]
    %v151 = vld [vmem:[#allocation2 + $0x370] sm:$0xff]
    %v152 = vld [vmem:[#allocation2 + $0x378] sm:$0xff]
    %v153 = vld [vmem:[%s2] sm:$0x3]
    %v155 = vperm.slane %v153, 0
    %v156 = vperm.slane %v153, 1
    %v163 = vunpack.c.l.b16 %v37
    %v164 = vunpack.c.h.b16 %v37
    %v165 = vunpack.c.l.b16 %v38
    %v166 = vunpack.c.h.b16 %v38
    %v167 = vunpack.c.l.b16 %v39
    %v168 = vunpack.c.h.b16 %v39
    %v169 = vunpack.c.l.b16 %v40
    %v170 = vpack.c.b16 %v163, %v163
    %v171 = vpack.c.b16 %v164, %v164
    %v172 = vpack.c.b16 %v165, %v165
    %v173 = vpack.c.b16 %v166, %v166
    %v174 = vpack.c.b16 %v167, %v167
    %v175 = vpack.c.b16 %v168, %v168
    %v176 = vpack.c.b16 %v169, %v169
    %v296 = vunpack.c.l.b16 %v41
    %v297 = vunpack.c.h.b16 %v41
    %v298 = vunpack.c.l.b16 %v42
    %v299 = vunpack.c.h.b16 %v42
    %v300 = vunpack.c.l.b16 %v43
    %v301 = vunpack.c.h.b16 %v43
    %v302 = vunpack.c.l.b16 %v44
    %v303 = vunpack.c.h.b16 %v44
    %v304 = vunpack.c.l.b16 %v45
    %v305 = vunpack.c.h.b16 %v45
    %v306 = vunpack.c.l.b16 %v46
    %v307 = vunpack.c.h.b16 %v46
    %v308 = vunpack.c.l.b16 %v47
    %v309 = vunpack.c.h.b16 %v47
    %v310 = vunpack.c.l.b16 %v48
    %v311 = vunpack.c.h.b16 %v48
    %v312 = vunpack.c.l.b16 %v49
    %v313 = vunpack.c.h.b16 %v49
    %v314 = vunpack.c.l.b16 %v50
    %v315 = vunpack.c.h.b16 %v50
    %v316 = vunpack.c.l.b16 %v51
    %v317 = vunpack.c.h.b16 %v51
    %v318 = vunpack.c.l.b16 %v52
    %v319 = vunpack.c.h.b16 %v52
    %v320 = vunpack.c.l.b16 %v53
    %v321 = vunpack.c.h.b16 %v53
    %v322 = vunpack.c.l.b16 %v54
    %v323 = vunpack.c.h.b16 %v54
    %v324 = vunpack.c.l.b16 %v55
    %v325 = vunpack.c.h.b16 %v55
    %v326 = vunpack.c.l.b16 %v56
    %v327 = vunpack.c.h.b16 %v56
    %v328 = vunpack.c.l.b16 %v57
    %v329 = vunpack.c.h.b16 %v57
    %v330 = vunpack.c.l.b16 %v58
    %v331 = vunpack.c.h.b16 %v58
    %v332 = vunpack.c.l.b16 %v59
    %v333 = vunpack.c.h.b16 %v59
    %v334 = vunpack.c.l.b16 %v60
    %v335 = vunpack.c.h.b16 %v60
    %v336 = vunpack.c.l.b16 %v61
    %v337 = vunpack.c.h.b16 %v61
    %v338 = vunpack.c.l.b16 %v62
    %v339 = vunpack.c.h.b16 %v62
    %v340 = vunpack.c.l.b16 %v63
    %v341 = vunpack.c.h.b16 %v63
    %v342 = vunpack.c.l.b16 %v64
    %v343 = vunpack.c.h.b16 %v64
    %v344 = vunpack.c.l.b16 %v65
    %v345 = vunpack.c.h.b16 %v65
    %v346 = vunpack.c.l.b16 %v66
    %v347 = vunpack.c.h.b16 %v66
    %v348 = vunpack.c.l.b16 %v67
    %v349 = vunpack.c.h.b16 %v67
    %v350 = vunpack.c.l.b16 %v68
    %v351 = vunpack.c.h.b16 %v68
    %v352 = vunpack.c.l.b16 %v69
    %v353 = vunpack.c.h.b16 %v69
    %v354 = vunpack.c.l.b16 %v70
    %v355 = vunpack.c.h.b16 %v70
    %v356 = vunpack.c.l.b16 %v71
    %v357 = vunpack.c.h.b16 %v71
    %v358 = vunpack.c.l.b16 %v72
    %v359 = vunpack.c.h.b16 %v72
    %v360 = vunpack.c.l.b16 %v73
    %v361 = vunpack.c.h.b16 %v73
    %v362 = vunpack.c.l.b16 %v74
    %v363 = vunpack.c.h.b16 %v74
    %v364 = vunpack.c.l.b16 %v75
    %v365 = vunpack.c.h.b16 %v75
    %v366 = vunpack.c.l.b16 %v76
    %v367 = vunpack.c.h.b16 %v76
    %v368 = vunpack.c.l.b16 %v77
    %v369 = vunpack.c.h.b16 %v77
    %v370 = vunpack.c.l.b16 %v78
    %v371 = vunpack.c.h.b16 %v78
    %v372 = vunpack.c.l.b16 %v79
    %v373 = vunpack.c.h.b16 %v79
    %v374 = vunpack.c.l.b16 %v80
    %v375 = vunpack.c.h.b16 %v80
    %v376 = vunpack.c.l.b16 %v81
    %v377 = vunpack.c.h.b16 %v81
    %v378 = vunpack.c.l.b16 %v82
    %v379 = vunpack.c.h.b16 %v82
    %v380 = vunpack.c.l.b16 %v83
    %v381 = vunpack.c.h.b16 %v83
    %v382 = vunpack.c.l.b16 %v84
    %v383 = vunpack.c.h.b16 %v84
    %v384 = vunpack.c.l.b16 %v85
    %v385 = vunpack.c.h.b16 %v85
    %v386 = vunpack.c.l.b16 %v86
    %v387 = vunpack.c.h.b16 %v86
    %v388 = vunpack.c.l.b16 %v87
    %v389 = vunpack.c.h.b16 %v87
    %v390 = vunpack.c.l.b16 %v88
    %v391 = vunpack.c.h.b16 %v88
    %v392 = vunpack.c.l.b16 %v89
    %v393 = vunpack.c.h.b16 %v89
    %v394 = vunpack.c.l.b16 %v90
    %v395 = vunpack.c.h.b16 %v90
    %v396 = vunpack.c.l.b16 %v91
    %v397 = vunpack.c.h.b16 %v91
    %v398 = vunpack.c.l.b16 %v92
    %v399 = vunpack.c.h.b16 %v92
    %v400 = vunpack.c.l.b16 %v93
    %v401 = vunpack.c.h.b16 %v93
    %v402 = vunpack.c.l.b16 %v94
    %v403 = vunpack.c.h.b16 %v94
    %v404 = vunpack.c.l.b16 %v95
    %v405 = vunpack.c.h.b16 %v95
    %v406 = vunpack.c.l.b16 %v96
    %v407 = vunpack.c.h.b16 %v96
    %v408 = vunpack.c.l.b16 %v97
    %v409 = vunpack.c.h.b16 %v97
    %v410 = vunpack.c.l.b16 %v98
    %v411 = vunpack.c.h.b16 %v98
    %v412 = vunpack.c.l.b16 %v99
    %v413 = vunpack.c.h.b16 %v99
    %v414 = vunpack.c.l.b16 %v100
    %v415 = vunpack.c.h.b16 %v100
    %v416 = vunpack.c.l.b16 %v101
    %v417 = vunpack.c.h.b16 %v101
    %v418 = vunpack.c.l.b16 %v102
    %v419 = vunpack.c.h.b16 %v102
    %v420 = vunpack.c.l.b16 %v103
    %v421 = vunpack.c.h.b16 %v103
    %v422 = vunpack.c.l.b16 %v104
    %v423 = vunpack.c.h.b16 %v104
    %v424 = vunpack.c.l.b16 %v105
    %v425 = vunpack.c.h.b16 %v105
    %v426 = vunpack.c.l.b16 %v106
    %v427 = vunpack.c.h.b16 %v106
    %v428 = vunpack.c.l.b16 %v107
    %v429 = vunpack.c.h.b16 %v107
    %v430 = vunpack.c.l.b16 %v108
    %v431 = vunpack.c.h.b16 %v108
    %v432 = vunpack.c.l.b16 %v109
    %v433 = vunpack.c.h.b16 %v109
    %v434 = vunpack.c.l.b16 %v110
    %v435 = vunpack.c.h.b16 %v110
    %v436 = vunpack.c.l.b16 %v111
    %v437 = vunpack.c.h.b16 %v111
    %v438 = vunpack.c.l.b16 %v112
    %v439 = vunpack.c.h.b16 %v112
    %v440 = vunpack.c.l.b16 %v113
    %v441 = vunpack.c.h.b16 %v113
    %v442 = vunpack.c.l.b16 %v114
    %v443 = vunpack.c.h.b16 %v114
    %v444 = vunpack.c.l.b16 %v115
    %v445 = vunpack.c.h.b16 %v115
    %v446 = vunpack.c.l.b16 %v116
    %v447 = vunpack.c.h.b16 %v116
    %v448 = vunpack.c.l.b16 %v117
    %v449 = vunpack.c.h.b16 %v117
    %v450 = vunpack.c.l.b16 %v118
    %v451 = vunpack.c.h.b16 %v118
    %v452 = vunpack.c.l.b16 %v119
    %v453 = vunpack.c.h.b16 %v119
    %v454 = vunpack.c.l.b16 %v120
    %v455 = vunpack.c.h.b16 %v120
    %v456 = vunpack.c.l.b16 %v121
    %v457 = vunpack.c.h.b16 %v121
    %v458 = vunpack.c.l.b16 %v122
    %v459 = vunpack.c.h.b16 %v122
    %v460 = vunpack.c.l.b16 %v123
    %v461 = vunpack.c.h.b16 %v123
    %v462 = vunpack.c.l.b16 %v124
    %v463 = vunpack.c.h.b16 %v124
    %v464 = vunpack.c.l.b16 %v125
    %v465 = vunpack.c.h.b16 %v125
    %v466 = vunpack.c.l.b16 %v126
    %v467 = vunpack.c.h.b16 %v126
    %v468 = vunpack.c.l.b16 %v127
    %v469 = vunpack.c.h.b16 %v127
    %v470 = vunpack.c.l.b16 %v128
    %v471 = vunpack.c.h.b16 %v128
    %v472 = vunpack.c.l.b16 %v129
    %v473 = vunpack.c.h.b16 %v129
    %v474 = vunpack.c.l.b16 %v130
    %v475 = vunpack.c.h.b16 %v130
    %v476 = vunpack.c.l.b16 %v131
    %v477 = vunpack.c.h.b16 %v131
    %v478 = vunpack.c.l.b16 %v132
    %v479 = vunpack.c.h.b16 %v132
    %v480 = vunpack.c.l.b16 %v133
    %v481 = vunpack.c.h.b16 %v133
    %v482 = vunpack.c.l.b16 %v134
    %v483 = vunpack.c.h.b16 %v134
    %v484 = vunpack.c.l.b16 %v135
    %v485 = vunpack.c.h.b16 %v135
    %v486 = vunpack.c.l.b16 %v136
    %v487 = vunpack.c.h.b16 %v136
    %v488 = vunpack.c.l.b16 %v137
    %v489 = vunpack.c.h.b16 %v137
    %v490 = vunpack.c.l.b16 %v138
    %v491 = vunpack.c.h.b16 %v138
    %v492 = vunpack.c.l.b16 %v139
    %v493 = vunpack.c.h.b16 %v139
    %v494 = vunpack.c.l.b16 %v140
    %v495 = vunpack.c.h.b16 %v140
    %v496 = vunpack.c.l.b16 %v141
    %v497 = vunpack.c.h.b16 %v141
    %v498 = vunpack.c.l.b16 %v142
    %v499 = vunpack.c.h.b16 %v142
    %v500 = vunpack.c.l.b16 %v143
    %v501 = vunpack.c.h.b16 %v143
    %v502 = vunpack.c.l.b16 %v144
    %v503 = vunpack.c.h.b16 %v144
    %v504 = vunpack.c.l.b16 %v145
    %v505 = vunpack.c.h.b16 %v145
    %v506 = vunpack.c.l.b16 %v146
    %v507 = vunpack.c.h.b16 %v146
    %v508 = vunpack.c.l.b16 %v147
    %v509 = vunpack.c.h.b16 %v147
    %v510 = vunpack.c.l.b16 %v148
    %v511 = vunpack.c.h.b16 %v148
    %v512 = vunpack.c.l.b16 %v149
    %v513 = vunpack.c.h.b16 %v149
    %v514 = vunpack.c.l.b16 %v150
    %v515 = vunpack.c.h.b16 %v150
    %v516 = vunpack.c.l.b16 %v151
    %v517 = vunpack.c.h.b16 %v151
    %v518 = vunpack.c.l.b16 %v152
    %v519 = vunpack.c.h.b16 %v152
    %v520 = vpack.c.b16 %v298, %v296
    %v521 = vpack.c.b16 %v299, %v297
    %v522 = vpack.c.b16 %v302, %v300
    %v523 = vpack.c.b16 %v303, %v301
    %v524 = vpack.c.b16 %v306, %v304
    %v525 = vpack.c.b16 %v307, %v305
    %v526 = vpack.c.b16 %v310, %v308
    %v527 = vpack.c.b16 %v311, %v309
    %v528 = vpack.c.b16 %v314, %v312
    %v529 = vpack.c.b16 %v315, %v313
    %v530 = vpack.c.b16 %v318, %v316
    %v531 = vpack.c.b16 %v319, %v317
    %v532 = vpack.c.b16 %v322, %v320
    %v533 = vpack.c.b16 %v323, %v321
    %v534 = vpack.c.b16 %v326, %v324
    %v535 = vpack.c.b16 %v327, %v325
    %v536 = vpack.c.b16 %v330, %v328
    %v537 = vpack.c.b16 %v331, %v329
    %v538 = vpack.c.b16 %v334, %v332
    %v539 = vpack.c.b16 %v335, %v333
    %v540 = vpack.c.b16 %v338, %v336
    %v541 = vpack.c.b16 %v339, %v337
    %v542 = vpack.c.b16 %v342, %v340
    %v543 = vpack.c.b16 %v343, %v341
    %v544 = vpack.c.b16 %v346, %v344
    %v545 = vpack.c.b16 %v347, %v345
    %v546 = vpack.c.b16 %v350, %v348
    %v547 = vpack.c.b16 %v351, %v349
    %v548 = vpack.c.b16 %v354, %v352
    %v549 = vpack.c.b16 %v355, %v353
    %v550 = vpack.c.b16 %v358, %v356
    %v551 = vpack.c.b16 %v359, %v357
    %v552 = vpack.c.b16 %v362, %v360
    %v553 = vpack.c.b16 %v363, %v361
    %v554 = vpack.c.b16 %v366, %v364
    %v555 = vpack.c.b16 %v367, %v365
    %v556 = vpack.c.b16 %v370, %v368
    %v557 = vpack.c.b16 %v371, %v369
    %v558 = vpack.c.b16 %v374, %v372
    %v559 = vpack.c.b16 %v375, %v373
    %v560 = vpack.c.b16 %v378, %v376
    %v561 = vpack.c.b16 %v379, %v377
    %v562 = vpack.c.b16 %v382, %v380
    %v563 = vpack.c.b16 %v383, %v381
    %v564 = vpack.c.b16 %v386, %v384
    %v565 = vpack.c.b16 %v387, %v385
    %v566 = vpack.c.b16 %v390, %v388
    %v567 = vpack.c.b16 %v391, %v389
    %v568 = vpack.c.b16 %v394, %v392
    %v569 = vpack.c.b16 %v395, %v393
    %v570 = vpack.c.b16 %v398, %v396
    %v571 = vpack.c.b16 %v399, %v397
    %v572 = vpack.c.b16 %v402, %v400
    %v573 = vpack.c.b16 %v403, %v401
    %v574 = vpack.c.b16 %v406, %v404
    %v575 = vpack.c.b16 %v407, %v405
    %v576 = vpack.c.b16 %v410, %v408
    %v577 = vpack.c.b16 %v411, %v409
    %v578 = vpack.c.b16 %v414, %v412
    %v579 = vpack.c.b16 %v415, %v413
    %v580 = vpack.c.b16 %v418, %v416
    %v581 = vpack.c.b16 %v419, %v417
    %v582 = vpack.c.b16 %v422, %v420
    %v583 = vpack.c.b16 %v423, %v421
    %v584 = vpack.c.b16 %v426, %v424
    %v585 = vpack.c.b16 %v427, %v425
    %v586 = vpack.c.b16 %v430, %v428
    %v587 = vpack.c.b16 %v431, %v429
    %v588 = vpack.c.b16 %v434, %v432
    %v589 = vpack.c.b16 %v435, %v433
    %v590 = vpack.c.b16 %v438, %v436
    %v591 = vpack.c.b16 %v439, %v437
    %v592 = vpack.c.b16 %v442, %v440
    %v593 = vpack.c.b16 %v443, %v441
    %v594 = vpack.c.b16 %v446, %v444
    %v595 = vpack.c.b16 %v447, %v445
    %v596 = vpack.c.b16 %v450, %v448
    %v597 = vpack.c.b16 %v451, %v449
    %v598 = vpack.c.b16 %v454, %v452
    %v599 = vpack.c.b16 %v455, %v453
    %v600 = vpack.c.b16 %v458, %v456
    %v601 = vpack.c.b16 %v459, %v457
    %v602 = vpack.c.b16 %v462, %v460
    %v603 = vpack.c.b16 %v463, %v461
    %v604 = vpack.c.b16 %v466, %v464
    %v605 = vpack.c.b16 %v467, %v465
    %v606 = vpack.c.b16 %v470, %v468
    %v607 = vpack.c.b16 %v471, %v469
    %v608 = vpack.c.b16 %v474, %v472
    %v609 = vpack.c.b16 %v475, %v473
    %v610 = vpack.c.b16 %v478, %v476
    %v611 = vpack.c.b16 %v479, %v477
    %v612 = vpack.c.b16 %v482, %v480
    %v613 = vpack.c.b16 %v483, %v481
    %v614 = vpack.c.b16 %v486, %v484
    %v615 = vpack.c.b16 %v487, %v485
    %v616 = vpack.c.b16 %v490, %v488
    %v617 = vpack.c.b16 %v491, %v489
    %v618 = vpack.c.b16 %v494, %v492
    %v619 = vpack.c.b16 %v495, %v493
    %v620 = vpack.c.b16 %v498, %v496
    %v621 = vpack.c.b16 %v499, %v497
    %v622 = vpack.c.b16 %v502, %v500
    %v623 = vpack.c.b16 %v503, %v501
    %v624 = vpack.c.b16 %v506, %v504
    %v625 = vpack.c.b16 %v507, %v505
    %v626 = vpack.c.b16 %v510, %v508
    %v627 = vpack.c.b16 %v511, %v509
    %v628 = vpack.c.b16 %v514, %v512
    %v629 = vpack.c.b16 %v515, %v513
    %v630 = vpack.c.b16 %v518, %v516
    %v631 = vpack.c.b16 %v519, %v517
    %744 = vmatpush.bf16.msra.mxu0 %v534
    %745 = vmatpush.bf16.msra.mxu0 %v532
    %746 = vmatpush.bf16.msra.mxu0 %v530
    %747 = vmatpush.bf16.msra.mxu0 %v528
    %748 = vmatpush.bf16.msra.mxu0 %v526
    %749 = vmatpush.bf16.msra.mxu0 %v524
    %750 = vmatpush.bf16.msra.mxu0 %v522
    %751 = vmatpush.bf16.msra.mxu0 %v520
    %752 = vmatmul.bf16.gmra.mxu0 %v170
    %v753 = vpop.f32.mrf.mxu0
    %v754 = vadd.f32 %v155, %v753
    %v755 = vpop.f32.mrf.mxu0
    %756 = vdwg.mxu0
    %757 = vmatpush.bf16.msra.mxu0 %v550
    %758 = vmatpush.bf16.msra.mxu0 %v548
    %759 = vmatpush.bf16.msra.mxu0 %v546
    %760 = vmatpush.bf16.msra.mxu0 %v544
    %761 = vmatpush.bf16.msra.mxu0 %v542
    %762 = vmatpush.bf16.msra.mxu0 %v540
    %763 = vmatpush.bf16.msra.mxu0 %v538
    %764 = vmatpush.bf16.msra.mxu0 %v536
    %765 = vmatmul.bf16.gmra.mxu0 %v171
    %v766 = vpop.f32.mrf.mxu0
    %v767 = vadd.f32 %v754, %v766
    %v768 = vpop.f32.mrf.mxu0
    %769 = vdwg.mxu0
    %770 = vmatpush.bf16.msra.mxu0 %v566
    %771 = vmatpush.bf16.msra.mxu0 %v564
    %772 = vmatpush.bf16.msra.mxu0 %v562
    %773 = vmatpush.bf16.msra.mxu0 %v560
    %774 = vmatpush.bf16.msra.mxu0 %v558
    %775 = vmatpush.bf16.msra.mxu0 %v556
    %776 = vmatpush.bf16.msra.mxu0 %v554
    %777 = vmatpush.bf16.msra.mxu0 %v552
    %778 = vmatmul.bf16.gmra.mxu0 %v172
    %v779 = vpop.f32.mrf.mxu0
    %v780 = vadd.f32 %v767, %v779
    %v781 = vpop.f32.mrf.mxu0
    %782 = vdwg.mxu0
    %783 = vmatpush.bf16.msra.mxu0 %v582
    %784 = vmatpush.bf16.msra.mxu0 %v580
    %785 = vmatpush.bf16.msra.mxu0 %v578
    %786 = vmatpush.bf16.msra.mxu0 %v576
    %787 = vmatpush.bf16.msra.mxu0 %v574
    %788 = vmatpush.bf16.msra.mxu0 %v572
    %789 = vmatpush.bf16.msra.mxu0 %v570
    %790 = vmatpush.bf16.msra.mxu0 %v568
    %791 = vmatmul.bf16.gmra.mxu0 %v173
    %v792 = vpop.f32.mrf.mxu0
    %v793 = vadd.f32 %v780, %v792
    %v794 = vpop.f32.mrf.mxu0
    %795 = vdwg.mxu0
    %796 = vmatpush.bf16.msra.mxu0 %v598
    %797 = vmatpush.bf16.msra.mxu0 %v596
    %798 = vmatpush.bf16.msra.mxu0 %v594
    %799 = vmatpush.bf16.msra.mxu0 %v592
    %800 = vmatpush.bf16.msra.mxu0 %v590
    %801 = vmatpush.bf16.msra.mxu0 %v588
    %802 = vmatpush.bf16.msra.mxu0 %v586
    %803 = vmatpush.bf16.msra.mxu0 %v584
    %804 = vmatmul.bf16.gmra.mxu0 %v174
    %v805 = vpop.f32.mrf.mxu0
    %v806 = vadd.f32 %v793, %v805
    %v807 = vpop.f32.mrf.mxu0
    %808 = vdwg.mxu0
    %809 = vmatpush.bf16.msra.mxu0 %v614
    %810 = vmatpush.bf16.msra.mxu0 %v612
    %811 = vmatpush.bf16.msra.mxu0 %v610
    %812 = vmatpush.bf16.msra.mxu0 %v608
    %813 = vmatpush.bf16.msra.mxu0 %v606
    %814 = vmatpush.bf16.msra.mxu0 %v604
    %815 = vmatpush.bf16.msra.mxu0 %v602
    %816 = vmatpush.bf16.msra.mxu0 %v600
    %817 = vmatmul.bf16.gmra.mxu0 %v175
    %v818 = vpop.f32.mrf.mxu0
    %v819 = vadd.f32 %v806, %v818
    %v820 = vpop.f32.mrf.mxu0
    %821 = vdwg.mxu0
    %822 = vmatpush.bf16.msra.mxu0 %v630
    %823 = vmatpush.bf16.msra.mxu0 %v628
    %824 = vmatpush.bf16.msra.mxu0 %v626
    %825 = vmatpush.bf16.msra.mxu0 %v624
    %826 = vmatpush.bf16.msra.mxu0 %v622
    %827 = vmatpush.bf16.msra.mxu0 %v620
    %828 = vmatpush.bf16.msra.mxu0 %v618
    %829 = vmatpush.bf16.msra.mxu0 %v616
    %830 = vmatmul.bf16.gmra.mxu0 %v176
    %v831 = vpop.f32.mrf.mxu0
    %v832 = vadd.f32 %v819, %v831
    %v833 = vpop.f32.mrf.mxu0
    %834 = vdwg.mxu0
    %835 = vmatpush.bf16.msra.mxu0 %v535
    %836 = vmatpush.bf16.msra.mxu0 %v533
    %837 = vmatpush.bf16.msra.mxu0 %v531
    %838 = vmatpush.bf16.msra.mxu0 %v529
    %839 = vmatpush.bf16.msra.mxu0 %v527
    %840 = vmatpush.bf16.msra.mxu0 %v525
    %841 = vmatpush.bf16.msra.mxu0 %v523
    %842 = vmatpush.bf16.msra.mxu0 %v521
    %843 = vmatmul.bf16.gmra.mxu0 %v170
    %v844 = vpop.f32.mrf.mxu0
    %v845 = vadd.f32 %v156, %v844
    %v846 = vpop.f32.mrf.mxu0
    %847 = vdwg.mxu0
    %848 = vmatpush.bf16.msra.mxu0 %v551
    %849 = vmatpush.bf16.msra.mxu0 %v549
    %850 = vmatpush.bf16.msra.mxu0 %v547
    %851 = vmatpush.bf16.msra.mxu0 %v545
    %852 = vmatpush.bf16.msra.mxu0 %v543
    %853 = vmatpush.bf16.msra.mxu0 %v541
    %854 = vmatpush.bf16.msra.mxu0 %v539
    %855 = vmatpush.bf16.msra.mxu0 %v537
    %856 = vmatmul.bf16.gmra.mxu0 %v171
    %v857 = vpop.f32.mrf.mxu0
    %v858 = vadd.f32 %v845, %v857
    %v859 = vpop.f32.mrf.mxu0
    %860 = vdwg.mxu0
    %861 = vmatpush.bf16.msra.mxu0 %v567
    %862 = vmatpush.bf16.msra.mxu0 %v565
    %863 = vmatpush.bf16.msra.mxu0 %v563
    %864 = vmatpush.bf16.msra.mxu0 %v561
    %865 = vmatpush.bf16.msra.mxu0 %v559
    %866 = vmatpush.bf16.msra.mxu0 %v557
    %867 = vmatpush.bf16.msra.mxu0 %v555
    %868 = vmatpush.bf16.msra.mxu0 %v553
    %869 = vmatmul.bf16.gmra.mxu0 %v172
    %v870 = vpop.f32.mrf.mxu0
    %v871 = vadd.f32 %v858, %v870
    %v872 = vpop.f32.mrf.mxu0
    %873 = vdwg.mxu0
    %874 = vmatpush.bf16.msra.mxu0 %v583
    %875 = vmatpush.bf16.msra.mxu0 %v581
    %876 = vmatpush.bf16.msra.mxu0 %v579
    %877 = vmatpush.bf16.msra.mxu0 %v577
    %878 = vmatpush.bf16.msra.mxu0 %v575
    %879 = vmatpush.bf16.msra.mxu0 %v573
    %880 = vmatpush.bf16.msra.mxu0 %v571
    %881 = vmatpush.bf16.msra.mxu0 %v569
    %882 = vmatmul.bf16.gmra.mxu0 %v173
    %v883 = vpop.f32.mrf.mxu0
    %v884 = vadd.f32 %v871, %v883
    %v885 = vpop.f32.mrf.mxu0
    %886 = vdwg.mxu0
    %887 = vmatpush.bf16.msra.mxu0 %v599
    %888 = vmatpush.bf16.msra.mxu0 %v597
    %889 = vmatpush.bf16.msra.mxu0 %v595
    %890 = vmatpush.bf16.msra.mxu0 %v593
    %891 = vmatpush.bf16.msra.mxu0 %v591
    %892 = vmatpush.bf16.msra.mxu0 %v589
    %893 = vmatpush.bf16.msra.mxu0 %v587
    %894 = vmatpush.bf16.msra.mxu0 %v585
    %895 = vmatmul.bf16.gmra.mxu0 %v174
    %v896 = vpop.f32.mrf.mxu0
    %v897 = vadd.f32 %v884, %v896
    %v898 = vpop.f32.mrf.mxu0
    %899 = vdwg.mxu0
    %900 = vmatpush.bf16.msra.mxu0 %v615
    %901 = vmatpush.bf16.msra.mxu0 %v613
    %902 = vmatpush.bf16.msra.mxu0 %v611
    %903 = vmatpush.bf16.msra.mxu0 %v609
    %904 = vmatpush.bf16.msra.mxu0 %v607
    %905 = vmatpush.bf16.msra.mxu0 %v605
    %906 = vmatpush.bf16.msra.mxu0 %v603
    %907 = vmatpush.bf16.msra.mxu0 %v601
    %908 = vmatmul.bf16.gmra.mxu0 %v175
    %v909 = vpop.f32.mrf.mxu0
    %v910 = vadd.f32 %v897, %v909
    %v911 = vpop.f32.mrf.mxu0
    %912 = vdwg.mxu0
    %913 = vmatpush.bf16.msra.mxu0 %v631
    %914 = vmatpush.bf16.msra.mxu0 %v629
    %915 = vmatpush.bf16.msra.mxu0 %v627
    %916 = vmatpush.bf16.msra.mxu0 %v625
    %917 = vmatpush.bf16.msra.mxu0 %v623
    %918 = vmatpush.bf16.msra.mxu0 %v621
    %919 = vmatpush.bf16.msra.mxu0 %v619
    %920 = vmatpush.bf16.msra.mxu0 %v617
    %921 = vmatmul.bf16.gmra.mxu0 %v176
    %v922 = vpop.f32.mrf.mxu0
    %v923 = vadd.f32 %v910, %v922
    %v924 = vpop.f32.mrf.mxu0
    %925 = vdwg.mxu0
    %v926 = vmax.f32 %v832, 0.0
    %v927 = vmax.f32 %v923, 0.0
    %v928 = vpack.c.bf16 %v926, %v926
    %v929 = vpack.c.bf16 %v927, %v927
    %v930 = vld [vmem:[%s3] sm:$0xf]
    %v931 = vld [vmem:[%s3 + $0x4] sm:$0xf]
    %v932 = vld [vmem:[%s3 + $0x8] sm:$0xf]
    %v933 = vld [vmem:[%s3 + $0xc] sm:$0xf]
    %v934 = vld [vmem:[%s3 + $0x10] sm:$0xf]
    %v935 = vld [vmem:[%s3 + $0x14] sm:$0xf]
    %v936 = vld [vmem:[%s3 + $0x18] sm:$0xf]
    %v937 = vld [vmem:[%s3 + $0x1c] sm:$0xf]
    %v938 = vld [vmem:[%s3 + $0x20] sm:$0xf]
    %v939 = vld [vmem:[%s3 + $0x24] sm:$0xf]
    %v940 = vld [vmem:[%s3 + $0x28] sm:$0xf]
    %v941 = vld [vmem:[%s3 + $0x2c] sm:$0xf]
    %v942 = vld [vmem:[%s3 + $0x30] sm:$0xf]
    %v943 = vld [vmem:[%s3 + $0x34] sm:$0xf]
    %v944 = vld [vmem:[%s3 + $0x38] sm:$0xf]
    %v945 = vld [vmem:[%s3 + $0x3c] sm:$0xf]
    %v946 = vld [vmem:[%s3 + $0x40] sm:$0xf]
    %v947 = vld [vmem:[%s3 + $0x44] sm:$0xf]
    %v948 = vld [vmem:[%s3 + $0x48] sm:$0xf]
    %v949 = vld [vmem:[%s3 + $0x4c] sm:$0xf]
    %v950 = vld [vmem:[%s3 + $0x50] sm:$0xf]
    %v951 = vld [vmem:[%s3 + $0x54] sm:$0xf]
    %v952 = vld [vmem:[%s3 + $0x58] sm:$0xf]
    %v953 = vld [vmem:[%s3 + $0x5c] sm:$0xf]
    %v954 = vld [vmem:[%s3 + $0x60] sm:$0xf]
    %v955 = vld [vmem:[%s3 + $0x64] sm:$0xf]
    %v956 = vld [vmem:[%s3 + $0x68] sm:$0xf]
    %v957 = vld [vmem:[%s3 + $0x6c] sm:$0xf]
    %v958 = vld [vmem:[%s3 + $0x70] sm:$0xf]
    %v959 = vld [vmem:[%s3 + $0x74] sm:$0xf]
    %v960 = vld [vmem:[%s3 + $0x78] sm:$0xf]
    %v961 = vld [vmem:[%s3 + $0x7c] sm:$0xf]
    %v962 = vld [vmem:[%s4] sm:$0x1]
    %v964 = vperm.slane %v962, 0
    %v998 = vunpack.c.l.b16 %v930
    %v999 = vunpack.c.l.b16 %v931
    %v1000 = vunpack.c.l.b16 %v932
    %v1001 = vunpack.c.l.b16 %v933
    %v1002 = vunpack.c.l.b16 %v934
    %v1003 = vunpack.c.l.b16 %v935
    %v1004 = vunpack.c.l.b16 %v936
    %v1005 = vunpack.c.l.b16 %v937
    %v1006 = vunpack.c.l.b16 %v938
    %v1007 = vunpack.c.l.b16 %v939
    %v1008 = vunpack.c.l.b16 %v940
    %v1009 = vunpack.c.l.b16 %v941
    %v1010 = vunpack.c.l.b16 %v942
    %v1011 = vunpack.c.l.b16 %v943
    %v1012 = vunpack.c.l.b16 %v944
    %v1013 = vunpack.c.l.b16 %v945
    %v1014 = vunpack.c.l.b16 %v946
    %v1015 = vunpack.c.l.b16 %v947
    %v1016 = vunpack.c.l.b16 %v948
    %v1017 = vunpack.c.l.b16 %v949
    %v1018 = vunpack.c.l.b16 %v950
    %v1019 = vunpack.c.l.b16 %v951
    %v1020 = vunpack.c.l.b16 %v952
    %v1021 = vunpack.c.l.b16 %v953
    %v1022 = vunpack.c.l.b16 %v954
    %v1023 = vunpack.c.l.b16 %v955
    %v1024 = vunpack.c.l.b16 %v956
    %v1025 = vunpack.c.l.b16 %v957
    %v1026 = vunpack.c.l.b16 %v958
    %v1027 = vunpack.c.l.b16 %v959
    %v1028 = vunpack.c.l.b16 %v960
    %v1029 = vunpack.c.l.b16 %v961
    %v1030 = vpack.c.b16 %v999, %v998
    %v1031 = vpack.c.b16 %v1001, %v1000
    %v1032 = vpack.c.b16 %v1003, %v1002
    %v1033 = vpack.c.b16 %v1005, %v1004
    %v1034 = vpack.c.b16 %v1007, %v1006
    %v1035 = vpack.c.b16 %v1009, %v1008
    %v1036 = vpack.c.b16 %v1011, %v1010
    %v1037 = vpack.c.b16 %v1013, %v1012
    %v1038 = vpack.c.b16 %v1015, %v1014
    %v1039 = vpack.c.b16 %v1017, %v1016
    %v1040 = vpack.c.b16 %v1019, %v1018
    %v1041 = vpack.c.b16 %v1021, %v1020
    %v1042 = vpack.c.b16 %v1023, %v1022
    %v1043 = vpack.c.b16 %v1025, %v1024
    %v1044 = vpack.c.b16 %v1027, %v1026
    %v1045 = vpack.c.b16 %v1029, %v1028
    %1062 = vmatpush.bf16.msra.mxu0 %v1037
    %1063 = vmatpush.bf16.msra.mxu0 %v1036
    %1064 = vmatpush.bf16.msra.mxu0 %v1035
    %1065 = vmatpush.bf16.msra.mxu0 %v1034
    %1066 = vmatpush.bf16.msra.mxu0 %v1033
    %1067 = vmatpush.bf16.msra.mxu0 %v1032
    %1068 = vmatpush.bf16.msra.mxu0 %v1031
    %1069 = vmatpush.bf16.msra.mxu0 %v1030
    %1070 = vmatmul.bf16.gmra.mxu0 %v928
    %v1071 = vpop.f32.mrf.mxu0
    %v1072 = vadd.f32 %v964, %v1071
    %v1073 = vpop.f32.mrf.mxu0
    %1074 = vdwg.mxu0
    %1075 = vmatpush.bf16.msra.mxu0 %v1045
    %1076 = vmatpush.bf16.msra.mxu0 %v1044
    %1077 = vmatpush.bf16.msra.mxu0 %v1043
    %1078 = vmatpush.bf16.msra.mxu0 %v1042
    %1079 = vmatpush.bf16.msra.mxu0 %v1041
    %1080 = vmatpush.bf16.msra.mxu0 %v1040
    %1081 = vmatpush.bf16.msra.mxu0 %v1039
    %1082 = vmatpush.bf16.msra.mxu0 %v1038
    %1083 = vmatmul.bf16.gmra.mxu0 %v929
    %v1084 = vpop.f32.mrf.mxu0
    %v1085 = vadd.f32 %v1072, %v1084
    %v1086 = vpop.f32.mrf.mxu0
    %1087 = vdwg.mxu0
    %1088 = vmax.xlane.f32.xlu0 %v1085
    %v1089 = vpop.xlane.xlu0 %1088
    %v1090 = vsub.f32 %v1085, %v1089
    %v1091 = vmul.f32 %v1090, 1.442695
    %v1092 = vpow.pop %v1091
    %1093 = vadd.xlane.f32.xlu0 %v1092
    %v1094 = vpop.xlane.xlu0 %1093
    %v1095 = vlog2.pop %v1094
    %v1096 = vmul.f32 %v1095, 0.6931472
    %v1097 = vsub.f32 %v1090, %v1096
    %1098 = vst [vmem:[#allocation5] sm:$0xff] %v1097
    // Predicated region
    $region26: #{ann_forward.1} parent=1 // pred_check
      _
    $region27: #{ann_forward.1} parent=1 // pred_check_branch
      %1100 = sbr.rel (0) target = $region29
    $region28: #{ann_forward.1} parent=1 // pred_region
      %1102 = vsyncadd [#allocation4], 0
      %s1104 = sshll.u32 [#allocation5], 4
      %s1105 = int_to_ptr.vmem [resolvable:$true] %s1104
      %s1106 = sshll.u32 %s5, 4
      %s1107 = int_to_ptr.hbm [resolvable:$true] %s1106
      %1109 = dma.vmem_to_hbm [thread:$0]  %s1105, 128, %s1107, [#allocation4]
    $region29: #{ann_forward.1} parent=1 // pred_fallthru
      _
    // Predicated region
    $region30: #{ann_forward.1} parent=1 // pred_check
      _
    $region31: #{ann_forward.1} parent=1 // pred_check_branch
      %1111 = sbr.rel (0) target = $region33
    $region32: #{ann_forward.1} parent=1 // pred_region
      %1113 = dma.done [#allocation4], 128
    $region33: #{ann_forward.1} parent=1 // pred_fallthru
      _
    %1114 = vsyncpa [#allocation3], 1
    %1115 = vsyncpa [#allocation4], 1

</llo_original>
